<compile_context>
chip_gen: v5e
topology: v5e:2x2
jax: 0.10.0
libtpu: 0.0.40
codegen_flags: <defaults>
</compile_context>

<pallas_src>
import functools

import jax
import jax.numpy as jnp
from jax import lax
from jax.experimental import pallas as pl
from jax.experimental.pallas import tpu as pltpu


# ----------------------------------------------------------------------------
# Fused kernel: per-(image, split) per-class NLL partial sums + counts,
# accumulated in tiny (C, 1) VMEM scratch across pixel blocks.
# ----------------------------------------------------------------------------
def _fused_loss_kernel(x_ref, t_ref, *refs,
                       num_classes, ignore_index, pixel_tile, num_pixels,
                       blocks_per_split, full_blocks, needs_tail,
                       separate_ignore):
    if separate_ignore:
        s_ref, nv_ref, nh_ref, acc_s, acc_nv, acc_nh = refs
        accs = (acc_s, acc_nv, acc_nh)
    else:
        s_ref, nv_ref, acc_s, acc_nv = refs
        nh_ref = acc_nh = None
        accs = (acc_s, acc_nv)

    split = pl.program_id(1)
    p = pl.program_id(2)

    @pl.when(p == 0)
    def _():
        for a in accs:
            a[...] = jnp.zeros_like(a)

    # ---- shared per-block compute (class on sublanes, pixels on lanes) ------
    x = x_ref[0].astype(jnp.float32)          # (C, TP) logits (f32 in vregs)
    t = t_ref[0].astype(jnp.int32)            # (1, TP) targets

    # log-softmax pieces along the (tiny) class axis. Per-lane reductions, so
    # garbage in out-of-range tail lanes never contaminates in-range lanes.
    m = jnp.max(x, axis=0, keepdims=True)                               # (1,TP)
    lse = jnp.log(jnp.sum(jnp.exp(x - m), axis=0, keepdims=True)) + m   # (1,TP)
    nll = lse - x                                                       # (C,TP)

    cls = lax.broadcasted_iota(jnp.int32, (num_classes, 1), 0)          # (C,1)

    def accumulate(masked_tail):
        # Narrow (1, TP) mask work, folded into the target so each selection
        # costs exactly one wide compare (the one-hot) + one wide select.
        in_range = jnp.logical_and(t >= 0, t < num_classes)
        # TODO(synk): np.histogram's last bin is right-inclusive (counts
        # t == num_classes); we drop t == num_classes instead (edge case only).
        if masked_tail:
            gidx = split * blocks_per_split + p
            pix = gidx * pixel_tile + lax.broadcasted_iota(
                jnp.int32, (1, pixel_tile), 1)
            in_range = jnp.logical_and(in_range, pix < num_pixels)
        t_hist = jnp.where(in_range, t, -1)                             # (1,TP)
        onehot_h = t_hist == cls                                        # (C,TP)

        if separate_ignore:
            keep = jnp.logical_and(in_range, t != ignore_index)        # (1,TP)
            onehot_v = jnp.where(keep, t, -1) == cls                   # (C,TP)
            acc_nh[...] += jnp.sum(onehot_h.astype(jnp.float32),
                                   axis=1, keepdims=True)
        else:
            onehot_v = onehot_h   # ignore_index outside [0, C): masks identical

        # selects (not multiplies) -> NaN/Inf from unmasked tail lanes is dropped
        acc_s[...] += jnp.sum(jnp.where(onehot_v, nll, 0.0),
                              axis=1, keepdims=True)
        acc_nv[...] += jnp.sum(onehot_v.astype(jnp.float32),
                               axis=1, keepdims=True)

    if needs_tail:
        is_tail = (split * blocks_per_split + p) >= full_blocks

        @pl.when(jnp.logical_not(is_tail))
        def _():
            accumulate(False)          # steady state: no tail masking at all

        @pl.when(is_tail)
        def _():
            accumulate(True)           # partial / fully out-of-range block
    else:
        accumulate(False)

    # flush tiny per-class totals to the per-(image, split) output block
    @pl.when(p == pl.num_programs(2) - 1)
    def _():
        s_ref[0, 0] = acc_s[...]
        nv_ref[0, 0] = acc_nv[...]
        if separate_ignore:
            nh_ref[0, 0] = acc_nh[...]


# ----------------------------------------------------------------------------
# Wrapper
# ----------------------------------------------------------------------------
def image_based_cross_entropy_loss_2d(inputs, targets, *, num_classes,
                                      upper_bound=1.0, norm=False,
                                      ignore_index=255, pixel_tile=32768,
                                      core_splits=2):
    """inputs: (N, C, H, W) float logits; targets: (N, 1, H, W) int labels."""
    N, C, H, W = inputs.shape
    assert C == num_classes
    HW = H * W

    # NCHW is already (N, C, H*W) under a free reshape; keep native dtypes
    # (bf16 logits stay bf16 in HBM; narrow int targets stay narrow).
    x = inputs.reshape(N, C, HW)
    t = targets.reshape(N, 1, HW)
    if (not jnp.issubdtype(t.dtype, jnp.integer)) or t.dtype.itemsize > 4:
        t = t.astype(jnp.int32)   # only widen when unavoidable

    # ---- tile-size + VMEM budget -------------------------------------------
    x_bytes = jnp.dtype(x.dtype).itemsize
    t_bytes = jnp.dtype(t.dtype).itemsize
    sub = lambda b: {1: 32, 2: 16}.get(b, 8)                 # sublane packing
    c_pad = -(-C // sub(x_bytes)) * sub(x_bytes)
    per_pixel = 2 * (c_pad * x_bytes + sub(t_bytes) * t_bytes)   # double-buffered

    tp = min(pixel_tile, max(1024, ((16 << 20) // per_pixel) // 128 * 128))
    tp = (tp // 128) * 128                     # lane-aligned pixel tile
    if HW <= tp:
        tp = HW                                # single full-extent block
    assert tp == HW or tp % 128 == 0

    total_blocks = pl.cdiv(HW, tp)
    splits = core_splits if total_blocks >= core_splits else 1
    bps = pl.cdiv(total_blocks, splits)        # pixel blocks per split
    full_blocks = HW // tp                     # blocks needing no tail masking
    needs_tail = splits * bps * tp > HW        # any partial / fully-OOB block?

    separate_ignore = 0 <= ignore_index < num_classes

    kernel = functools.partial(
        _fused_loss_kernel, num_classes=C, ignore_index=ignore_index,
        pixel_tile=tp, num_pixels=HW, blocks_per_split=bps,
        full_blocks=full_blocks, needs_tail=needs_tail,
        separate_ignore=separate_ignore)

    def _blk(s, p):
        g = s * bps + p
        if splits * bps > total_blocks:        # static: clamp fully-OOB blocks
            g = jnp.minimum(g, total_blocks - 1)
        return g

    def x_map(n, s, p):
        return (n, 0, _blk(s, p))

    n_out = 3 if separate_ignore else 2
    out_spec = pl.BlockSpec((1, 1, C, 1), lambda n, s, p: (n, s, 0, 0))
    out_shape = jax.ShapeDtypeStruct((N, splits, C, 1), jnp.float32)

    buf_bytes = 2 * (c_pad * tp * x_bytes + sub(t_bytes) * tp * t_bytes)
    vmem_limit = int(min(56 << 20, max(32 << 20, buf_bytes + (12 << 20))))

    outs = pl.pallas_call(
        kernel,
        out_shape=(out_shape,) * n_out,
        grid=(N, splits, bps),
        in_specs=[
            pl.BlockSpec((1, C, tp), x_map),
            pl.BlockSpec((1, 1, tp), x_map),
        ],
        out_specs=(out_spec,) * n_out,
        scratch_shapes=[pltpu.VMEM((C, 1), jnp.float32) for _ in range(n_out)],
        compiler_params=pltpu.CompilerParams(
            dimension_semantics=("parallel", "parallel", "arbitrary"),
            vmem_limit_bytes=vmem_limit),
    )(x, t)

    if separate_ignore:
        s_p, nv_p, nh_p = outs
    else:
        s_p, nv_p = outs
        nh_p = nv_p                            # ignore class outside histogram

    # tiny glue: batch-wide histogram -> weights -> one global weighted mean
    # (matches the single nll_loss call over the batch in the reference module).
    s = jnp.sum(s_p[..., 0], axis=(0, 1))      # (C,) sum_valid (lse - logit_c)
    nv = jnp.sum(nv_p[..., 0], axis=(0, 1))    # (C,) NLL-valid counts
    nh = jnp.sum(nh_p[..., 0], axis=(0, 1))    # (C,) histogram counts

    hist = nh / jnp.maximum(jnp.sum(nh), 1.0)
    nz = (hist != 0).astype(jnp.float32)
    if norm:
        # TODO(synk): torch code yields 0*inf=NaN weights for absent classes in
        # norm mode; we use the finite 0 contribution instead.
        weights = jnp.where(hist != 0, upper_bound / hist, 0.0) + 1.0
    else:
        weights = nz * upper_bound * (1.0 - hist) + 1.0

    return jnp.sum(weights * s) / jnp.sum(weights * nv)


# ----------------------------------------------------------------------------
# Pure-JAX reference (for correctness checks)
# ----------------------------------------------------------------------------
def _reference_loss(inputs, targets, num_classes, upper_bound=1.0, norm=False,
                    ignore_index=255):
    N, C, H, W = inputs.shape
    x = jnp.transpose(inputs, (0, 2, 3, 1)).reshape(-1, C).astype(jnp.float32)
    t = targets.reshape(-1).astype(jnp.int32)

    in_range = (t >= 0) & (t < num_classes)
    safe_t = jnp.where(in_range, t, 0)
    counts = jnp.sum(jax.nn.one_hot(safe_t, num_classes)
                     * in_range[:, None].astype(jnp.float32), axis=0)
    hist = counts / jnp.sum(counts)
    nz = (hist != 0).astype(jnp.float32)
    if norm:
        w = jnp.where(hist != 0, upper_bound / hist, 0.0) + 1.0
    else:
        w = nz * upper_bound * (1.0 - hist) + 1.0

    logp = jax.nn.log_softmax(x, axis=-1)
    valid = ((t != ignore_index) & in_range).astype(jnp.float32)
    lp_t = jnp.take_along_axis(logp, safe_t[:, None], axis=1)[:, 0]
    w_t = w[safe_t] * valid
    return jnp.sum(-w_t * lp_t) / jnp.sum(w_t)


if __name__ == "__main__":
    def check(inputs, targets, C, *, ignore_index=255, pixel_tile=32768, tag=""):
        loss = image_based_cross_entropy_loss_2d(
            inputs, targets, num_classes=C, ignore_index=ignore_index,
            pixel_tile=pixel_tile)
        loss = jax.block_until_ready(loss)
        ref = _reference_loss(inputs, targets, C, ignore_index=ignore_index)
        assert bool(jnp.isfinite(loss)), f"{tag}: loss not finite"
        assert abs(float(loss) - float(ref)) < 1e-4 * max(1.0, abs(float(ref))), \
            f"{tag}: pallas={float(loss)} ref={float(ref)}"

    key = jax.random.PRNGKey(0)
    k1, k2, k3 = jax.random.split(key, 3)

    # 1) canonical small shape: single pixel block, single split
    N, C, H, W = 2, 4, 16, 16
    inputs = jax.random.normal(k1, (N, C, H, W), dtype=jnp.float32)
    labels = jax.random.randint(k2, (N, 1, H, W), 0, C)
    drop = jax.random.uniform(k3, (N, 1, H, W)) < 0.1       # some ignored pixels
    targets = jnp.where(drop, 255, labels).astype(jnp.int32)
    check(inputs, targets, C, tag="base")

    # 2) same data, tiny tile: multiple pixel blocks + 2-way core split
    check(inputs, targets, C, pixel_tile=128, tag="split")

    # 3) ragged tail + fully out-of-range block + odd class count + bf16 logits
    N, C, H, W = 2, 5, 18, 18                                # HW=324: 2 full + tail
    k4, k5, k6 = jax.random.split(jax.random.PRNGKey(1), 3)
    inputs = jax.random.normal(k4, (N, C, H, W), dtype=jnp.bfloat16)
    labels = jax.random.randint(k5, (N, 1, H, W), 0, C)
    drop = jax.random.uniform(k6, (N, 1, H, W)) < 0.1
    targets = jnp.where(drop, 255, labels).astype(jnp.int32)
    check(inputs, targets, C, pixel_tile=128, tag="tail")

    # 4) ignore_index inside [0, C): exercises the separate-ignore (3-output) path
    check(inputs, targets, C, ignore_index=2, pixel_tile=128, tag="ignore_in_range")

    print("KERNEL_OK")
</pallas_src>

<mosaic_0001>
module attributes {stable_mosaic.version = 11 : i64} {
  func.func @_fused_loss_kernel(%arg0: i32, %arg1: i32, %arg2: i32, %arg3: memref<1x4x256xf32, #tpu.memory_space<vmem>>, %arg4: memref<1x1x256xi32, #tpu.memory_space<vmem>>, %arg5: memref<1x1x4x1xf32, #tpu.memory_space<vmem>>, %arg6: memref<1x1x4x1xf32, #tpu.memory_space<vmem>>, %arg7: memref<4x1xf32, #tpu.memory_space<vmem>>, %arg8: memref<4x1xf32, #tpu.memory_space<vmem>>) attributes {dimension_semantics = [#tpu.dimension_semantics<parallel>, #tpu.dimension_semantics<parallel>, #tpu.dimension_semantics<arbitrary>], iteration_bounds = array<i64: 2, 1, 1>, scalar_prefetch = 0 : i64, scratch_operands = 2 : i64, tpu.core_type = #tpu.core_type<tc>, window_params = [{transform_indices = @transform_0, window_bounds = array<i64: 1, 4, 256>}, {transform_indices = @transform_1, window_bounds = array<i64: 1, 1, 256>}, {transform_indices = @transform_2, window_bounds = array<i64: 1, 1, 4, 1>}, {transform_indices = @transform_3, window_bounds = array<i64: 1, 1, 4, 1>}]} {
    %c0_i32 = arith.constant 0 : i32
    %0 = arith.cmpi eq, %arg2, %c0_i32 : i32
    %1 = arith.extui %0 : i1 to i32
    %c0_i32_0 = arith.constant 0 : i32
    %2 = arith.cmpi ne, %1, %c0_i32_0 : i32
    scf.if %2 {
      %cst_21 = arith.constant 0.000000e+00 : f32
      %46 = vector.broadcast %cst_21 : f32 to vector<4x1xf32>
      %c0_22 = arith.constant 0 : index
      %c0_23 = arith.constant 0 : index
      %47 = vector.load %arg7[%c0_22, %c0_23] : memref<4x1xf32, #tpu.memory_space<vmem>>, vector<4x1xf32>
      tpu.vector_store %arg7[%c0_22, %c0_23], %46 {strides = array<i32>} : memref<4x1xf32, #tpu.memory_space<vmem>>, vector<4x1xf32>,
      %cst_24 = arith.constant 0.000000e+00 : f32
      %48 = vector.broadcast %cst_24 : f32 to vector<4x1xf32>
      %c0_25 = arith.constant 0 : index
      %c0_26 = arith.constant 0 : index
      %49 = vector.load %arg8[%c0_25, %c0_26] : memref<4x1xf32, #tpu.memory_space<vmem>>, vector<4x1xf32>
      tpu.vector_store %arg8[%c0_25, %c0_26], %48 {strides = array<i32>} : memref<4x1xf32, #tpu.memory_space<vmem>>, vector<4x1xf32>,
    } else {
    }
    %c0 = arith.constant 0 : index
    %c0_1 = arith.constant 0 : index
    %c0_2 = arith.constant 0 : index
    %3 = vector.load %arg3[%c0, %c0_1, %c0_2] : memref<1x4x256xf32, #tpu.memory_space<vmem>>, vector<1x4x256xf32>
    %4 = vector.shape_cast %3 : vector<1x4x256xf32> to vector<4x256xf32>
    %c0_3 = arith.constant 0 : index
    %c0_4 = arith.constant 0 : index
    %c0_5 = arith.constant 0 : index
    %5 = vector.load %arg4[%c0_3, %c0_4, %c0_5] : memref<1x1x256xi32, #tpu.memory_space<vmem>>, vector<1x1x256xi32>
    %6 = vector.shape_cast %5 : vector<1x1x256xi32> to vector<1x256xi32>
    %cst = arith.constant dense<0xFF800000> : vector<256xf32>
    %7 = vector.multi_reduction <maximumf>, %4, %cst [0] : vector<4x256xf32> to vector<256xf32>
    %8 = vector.shape_cast %7 : vector<256xf32> to vector<1x256xf32>
    %9 = vector.broadcast %8 : vector<1x256xf32> to vector<4x256xf32>
    %10 = arith.subf %4, %9 : vector<4x256xf32>
    %11 = math.exp %10 : vector<4x256xf32>
    %cst_6 = arith.constant dense<0.000000e+00> : vector<256xf32>
    %12 = vector.multi_reduction <add>, %11, %cst_6 [0] : vector<4x256xf32> to vector<256xf32>
    %13 = vector.shape_cast %12 : vector<256xf32> to vector<1x256xf32>
    %14 = math.log %13 : vector<1x256xf32>
    %15 = arith.addf %14, %8 : vector<1x256xf32>
    %16 = vector.broadcast %15 : vector<1x256xf32> to vector<4x256xf32>
    %17 = arith.subf %16, %4 : vector<4x256xf32>
    %18 = tpu.iota {dimensions = array<i32: 0>} : vector<4x1xi32>
    %c0_i32_7 = arith.constant 0 : i32
    %19 = vector.broadcast %c0_i32_7 : i32 to vector<1x256xi32>
    %20 = arith.cmpi sge, %6, %19 : vector<1x256xi32>
    %c4_i32 = arith.constant 4 : i32
    %21 = vector.broadcast %c4_i32 : i32 to vector<1x256xi32>
    %22 = arith.cmpi slt, %6, %21 : vector<1x256xi32>
    %23 = arith.andi %20, %22 : vector<1x256xi1>
    %c-1_i32 = arith.constant -1 : i32
    %24 = vector.broadcast %c-1_i32 : i32 to vector<1x256xi32>
    %25 = arith.select %23, %6, %24 : vector<1x256xi1>, vector<1x256xi32>
    %26 = vector.broadcast %25 : vector<1x256xi32> to vector<4x256xi32>
    %27 = vector.broadcast %18 : vector<4x1xi32> to vector<4x256xi32>
    %28 = arith.cmpi eq, %26, %27 : vector<4x256xi32>
    %c0_8 = arith.constant 0 : index
    %c0_9 = arith.constant 0 : index
    %29 = vector.load %arg7[%c0_8, %c0_9] : memref<4x1xf32, #tpu.memory_space<vmem>>, vector<4x1xf32>
    %cst_10 = arith.constant 0.000000e+00 : f32
    %30 = vector.broadcast %cst_10 : f32 to vector<4x256xf32>
    %31 = arith.select %28, %17, %30 : vector<4x256xi1>, vector<4x256xf32>
    %cst_11 = arith.constant dense<0.000000e+00> : vector<4xf32>
    %32 = vector.multi_reduction <add>, %31, %cst_11 [1] : vector<4x256xf32> to vector<4xf32>
    %33 = vector.shape_cast %32 : vector<4xf32> to vector<4x1xf32>
    %34 = arith.addf %29, %33 : vector<4x1xf32>
    %c0_12 = arith.constant 0 : index
    %c0_13 = arith.constant 0 : index
    %35 = vector.load %arg7[%c0_12, %c0_13] : memref<4x1xf32, #tpu.memory_space<vmem>>, vector<4x1xf32>
    tpu.vector_store %arg7[%c0_12, %c0_13], %34 {strides = array<i32>} : memref<4x1xf32, #tpu.memory_space<vmem>>, vector<4x1xf32>,
    %c0_14 = arith.constant 0 : index
    %c0_15 = arith.constant 0 : index
    %36 = vector.load %arg8[%c0_14, %c0_15] : memref<4x1xf32, #tpu.memory_space<vmem>>, vector<4x1xf32>
    %37 = arith.extui %28 : vector<4x256xi1> to vector<4x256xi32>
    %38 = arith.sitofp %37 : vector<4x256xi32> to vector<4x256xf32>
    %cst_16 = arith.constant dense<0.000000e+00> : vector<4xf32>
    %39 = vector.multi_reduction <add>, %38, %cst_16 [1] : vector<4x256xf32> to vector<4xf32>
    %40 = vector.shape_cast %39 : vector<4xf32> to vector<4x1xf32>
    %41 = arith.addf %36, %40 : vector<4x1xf32>
    %c0_17 = arith.constant 0 : index
    %c0_18 = arith.constant 0 : index
    %42 = vector.load %arg8[%c0_17, %c0_18] : memref<4x1xf32, #tpu.memory_space<vmem>>, vector<4x1xf32>
    tpu.vector_store %arg8[%c0_17, %c0_18], %41 {strides = array<i32>} : memref<4x1xf32, #tpu.memory_space<vmem>>, vector<4x1xf32>,
    %c0_i32_19 = arith.constant 0 : i32
    %43 = arith.cmpi eq, %arg2, %c0_i32_19 : i32
    %44 = arith.extui %43 : i1 to i32
    %c0_i32_20 = arith.constant 0 : i32
    %45 = arith.cmpi ne, %44, %c0_i32_20 : i32
    scf.if %45 {
      %c0_21 = arith.constant 0 : index
      %c0_22 = arith.constant 0 : index
      %46 = vector.load %arg7[%c0_21, %c0_22] : memref<4x1xf32, #tpu.memory_space<vmem>>, vector<4x1xf32>
      %c0_23 = arith.constant 0 : index
      %c0_24 = arith.constant 0 : index
      %c0_25 = arith.constant 0 : index
      %c0_26 = arith.constant 0 : index
      %47 = vector.load %arg5[%c0_23, %c0_24, %c0_25, %c0_26] : memref<1x1x4x1xf32, #tpu.memory_space<vmem>>, vector<1x1x4x1xf32>
      %48 = vector.shape_cast %47 : vector<1x1x4x1xf32> to vector<4x1xf32>
      %49 = vector.shape_cast %46 : vector<4x1xf32> to vector<1x1x4x1xf32>
      tpu.vector_store %arg5[%c0_23, %c0_24, %c0_25, %c0_26], %49 {strides = array<i32>} : memref<1x1x4x1xf32, #tpu.memory_space<vmem>>, vector<1x1x4x1xf32>,
      %c0_27 = arith.constant 0 : index
      %c0_28 = arith.constant 0 : index
      %50 = vector.load %arg8[%c0_27, %c0_28] : memref<4x1xf32, #tpu.memory_space<vmem>>, vector<4x1xf32>
      %c0_29 = arith.constant 0 : index
      %c0_30 = arith.constant 0 : index
      %c0_31 = arith.constant 0 : index
      %c0_32 = arith.constant 0 : index
      %51 = vector.load %arg6[%c0_29, %c0_30, %c0_31, %c0_32] : memref<1x1x4x1xf32, #tpu.memory_space<vmem>>, vector<1x1x4x1xf32>
      %52 = vector.shape_cast %51 : vector<1x1x4x1xf32> to vector<4x1xf32>
      %53 = vector.shape_cast %50 : vector<4x1xf32> to vector<1x1x4x1xf32>
      tpu.vector_store %arg6[%c0_29, %c0_30, %c0_31, %c0_32], %53 {strides = array<i32>} : memref<1x1x4x1xf32, #tpu.memory_space<vmem>>, vector<1x1x4x1xf32>,
    } else {
    }
    return
  }
  func.func @transform_0(%arg0: i32, %arg1: i32, %arg2: i32) -> (i32, i32, i32) {
    %c1_i32 = arith.constant 1 : i32
    %0 = arith.muli %arg1, %c1_i32 : i32
    %1 = arith.addi %0, %arg2 : i32
    %c0_i32 = arith.constant 0 : i32
    %c0_i32_0 = arith.constant 0 : i32
    return %arg0, %c0_i32, %1 : i32, i32, i32
  }
  func.func @transform_1(%arg0: i32, %arg1: i32, %arg2: i32) -> (i32, i32, i32) {
    %c1_i32 = arith.constant 1 : i32
    %0 = arith.muli %arg1, %c1_i32 : i32
    %1 = arith.addi %0, %arg2 : i32
    %c0_i32 = arith.constant 0 : i32
    %c0_i32_0 = arith.constant 0 : i32
    return %arg0, %c0_i32, %1 : i32, i32, i32
  }
  func.func @transform_2(%arg0: i32, %arg1: i32, %arg2: i32) -> (i32, i32, i32, i32) {
    %c0_i32 = arith.constant 0 : i32
    %c0_i32_0 = arith.constant 0 : i32
    %c0_i32_1 = arith.constant 0 : i32
    return %arg0, %arg1, %c0_i32, %c0_i32_0 : i32, i32, i32, i32
  }
  func.func @transform_3(%arg0: i32, %arg1: i32, %arg2: i32) -> (i32, i32, i32, i32) {
    %c0_i32 = arith.constant 0 : i32
    %c0_i32_0 = arith.constant 0 : i32
    %c0_i32_1 = arith.constant 0 : i32
    return %arg0, %arg1, %c0_i32, %c0_i32_0 : i32, i32, i32, i32
  }
}

</mosaic_0001>

<llo_original>
// kernel: tpu_custom_call.1
$region0: #{tpu_custom_call.1}
  #allocation0 [shape = 'u32[]', space=smem, size = 0x4, offset = 0x4, fixed_abs, tag = 'smem constant byte address 0x4 - core index']
  #allocation1 [shape = 'u32[72,128]{1,0:T(1,128)}', space=vmem, size = 0x9000, scoped, tag = 'internal scratch']
  #allocation2 [shape = 'f32[4,1]{1,0:T(4,128)}', space=vmem, size = 0x800, scoped, tag = 'scratch operand']
  #allocation3 [shape = 'f32[4,1]{1,0:T(4,128)}', space=vmem, size = 0x800, scoped, tag = 'scratch operand']
  %s0 = inlined_call_operand.hbm [shape: f32[2,4,256], index: 0, kind: input, shape index: {}]
  %s1 = inlined_call_operand.hbm [shape: s32[2,1,256], index: 1, kind: input, shape index: {}]
  %s2 = inlined_call_operand.vmem [shape: f32[2,1,4,1], index: 2, kind: output, shape index: {0}]
  %s3 = inlined_call_operand.vmem [shape: f32[2,1,4,1], index: 3, kind: output, shape index: {1}]
  %4 = xla_tuple %s2, %s3
  %s5 = sld [smem:[#allocation0]]
  $region65: #{tpu_custom_call.1} parent=0
    _
  %s7 = ssub.s32 1, %s5
  %s8 = scalar_select 0, %s7, %s5
  $region1: #{tpu_custom_call.1} parent=0
    #allocation4 [shape = 'u8[8192]{0}', space=vmem, size = 0x2000, scoped, tag = 'input window, operand 0']
    #allocation5 [shape = 's32[2]{0}', space=sflag, size = 0x8, scoped, tag = 'scoped memory for tpu_custom_call.1']
    #allocation6 [shape = 'u8[2048]{0}', space=vmem, size = 0x800, scoped, tag = 'input window, operand 1']
    #allocation7 [shape = 's32[2]{0}', space=sflag, size = 0x8, scoped, tag = 'scoped memory for tpu_custom_call.1']
    %9 = vsyncpa [#allocation5], 0
    %s10 = scalar_lea.sflag [#allocation5], 1
    %11 = vsyncpa %s10, 0
    %12 = vsyncpa [#allocation7], 0
    %s13 = scalar_lea.sflag [#allocation7], 1
    %14 = vsyncpa %s13, 0
    loop: start=0, step=1, limit=4
    $region2: #{tpu_custom_call.1} parent=1 // loop_pre_header
      _
    $region3: #{tpu_custom_call.1} parent=1 // loop_header
      %s16 = sphi 0, %s20
      %p17 = scmp.ge.s32.totalorder %s16, 4
      %s23 = sphi 0, %s42
      %s24 = sphi 0, %s38
      %s25 = sphi 0, %s34
      %s26 = sphi 0, %s23
      %s27 = sphi 0, %s24
      %s28 = sphi 0, %s25
      %s29 = sphi 0, %s26
      %s30 = sphi 0, %s27
      %s31 = sphi 0, %s28
      %s49 = sphi 0, %s51
      %s52 = sphi 0, %s49
      %s53 = sphi 0, %s52
      %s69 = sphi 0, %s53
      %s79 = sphi 0, %s81
      %s82 = sphi 0, %s79
      %s83 = sphi 0, %s82
      %s99 = sphi 0, %s83
      %s107 = sphi 0, %s109
      %s110 = sphi 0, %s107
      %s111 = sphi 0, %s110
      %s127 = sphi 0, %s111
      %s135 = sphi 0, %s137
      %s138 = sphi 0, %s135
      %s139 = sphi 0, %s138
      %s155 = sphi 0, %s139
    $region4: #{tpu_custom_call.1} parent=1 // loop_header_branch
      %19 = sbr.rel (%p17) target = $region8
    $region5: #{tpu_custom_call.1} parent=1 // loop_body
      %s21 = ssub.s32 %s16, 1
      %s22 = ssub.s32 %s16, 2
      %s32 = sadd.s32 1, %s25
      %p33 = scmp.ge.s32.totalorder %s32, 1
      %s34 = scalar_select %p33, 0, %s32
      %s35 = sadd.s32 1, %s24
      %s36 = scalar_select %p33, %s35, %s24
      %p37 = scmp.ge.s32.totalorder %s36, 1
      %s38 = scalar_select %p37, 0, %s36
      %s39 = sadd.s32 1, %s23
      %s40 = scalar_select %p37, %s39, %s23
      %p41 = scmp.ge.s32.totalorder %s40, 2
      %s42 = scalar_select %p41, 0, %s40
      %s43 = sadd.s32 %s24, %s25
      %s44 = sadd.s32 %s38, %s34
      %s45 = ssub.s32 %s23, %s42
      %s46 = ssub.s32 %s43, %s44
      %s47 = sor.u32 %s45, %s46
      %p48 = scmp.eq.s32.totalorder %s47, 0
      %s50 = sadd.s32 %s49, 1
      %s51 = scalar_select %p48, %s49, %s50
      %p54 = pneg %p48
      %p55 = scmp.eq.s32.totalorder %s16, 1
      %p56 = por %p54, %p55
      %p57 = scmp.ne.s32.totalorder %s49, %s52
      %p58 = scmp.eq.s32.totalorder %s16, 0
      %p59 = por %p57, %p58
      %p60 = scmp.ne.s32.totalorder %s49, %s52
      %p61 = scmp.eq.s32.totalorder %s21, 1
      %p62 = por %p60, %p61
      %p63 = scmp.ne.s32.totalorder %s52, %s53
      %p64 = scmp.eq.s32.totalorder %s21, 0
      %p65 = por %p63, %p64
      %p66 = scmp.ne.s32.totalorder %s52, %s53
      %p67 = scmp.eq.s32.totalorder %s22, 1
      %p68 = por %p66, %p67
      %p70 = scmp.ne.s32.totalorder %s53, %s69
      %p71 = scmp.eq.s32.totalorder %s22, 0
      %p72 = por %p70, %p71
      %s73 = sadd.s32 %s24, %s25
      %s74 = sadd.s32 %s38, %s34
      %s75 = ssub.s32 %s23, %s42
      %s76 = ssub.s32 %s73, %s74
      %s77 = sor.u32 %s75, %s76
      %p78 = scmp.eq.s32.totalorder %s77, 0
      %s80 = sadd.s32 %s79, 1
      %s81 = scalar_select %p78, %s79, %s80
      %p84 = pneg %p78
      %p85 = scmp.eq.s32.totalorder %s16, 1
      %p86 = por %p84, %p85
      %p87 = scmp.ne.s32.totalorder %s79, %s82
      %p88 = scmp.eq.s32.totalorder %s16, 0
      %p89 = por %p87, %p88
      %p90 = scmp.ne.s32.totalorder %s79, %s82
      %p91 = scmp.eq.s32.totalorder %s21, 1
      %p92 = por %p90, %p91
      %p93 = scmp.ne.s32.totalorder %s82, %s83
      %p94 = scmp.eq.s32.totalorder %s21, 0
      %p95 = por %p93, %p94
      %p96 = scmp.ne.s32.totalorder %s82, %s83
      %p97 = scmp.eq.s32.totalorder %s22, 1
      %p98 = por %p96, %p97
      %p100 = scmp.ne.s32.totalorder %s83, %s99
      %p101 = scmp.eq.s32.totalorder %s22, 0
      %p102 = por %p100, %p101
      %s103 = ssub.s32 %s23, %s42
      %s104 = ssub.s32 %s24, %s38
      %s105 = sor.u32 %s103, %s104
      %p106 = scmp.eq.s32.totalorder %s105, 0
      %s108 = sadd.s32 %s107, 1
      %s109 = scalar_select %p106, %s107, %s108
      %p112 = pneg %p106
      %p113 = scmp.eq.s32.totalorder %s16, 1
      %p114 = por %p112, %p113
      %p115 = scmp.ne.s32.totalorder %s107, %s110
      %p116 = scmp.eq.s32.totalorder %s16, 0
      %p117 = por %p115, %p116
      %p118 = scmp.ne.s32.totalorder %s107, %s110
      %p119 = scmp.eq.s32.totalorder %s21, 1
      %p120 = por %p118, %p119
      %p121 = scmp.ne.s32.totalorder %s110, %s111
      %p122 = scmp.eq.s32.totalorder %s21, 0
      %p123 = por %p121, %p122
      %p124 = scmp.ne.s32.totalorder %s110, %s111
      %p125 = scmp.eq.s32.totalorder %s22, 1
      %p126 = por %p124, %p125
      %p128 = scmp.ne.s32.totalorder %s111, %s127
      %p129 = scmp.eq.s32.totalorder %s22, 0
      %p130 = por %p128, %p129
      %s131 = ssub.s32 %s23, %s42
      %s132 = ssub.s32 %s24, %s38
      %s133 = sor.u32 %s131, %s132
      %p134 = scmp.eq.s32.totalorder %s133, 0
      %s136 = sadd.s32 %s135, 1
      %s137 = scalar_select %p134, %s135, %s136
      %p140 = pneg %p134
      %p141 = scmp.eq.s32.totalorder %s16, 1
      %p142 = por %p140, %p141
      %p143 = scmp.ne.s32.totalorder %s135, %s138
      %p144 = scmp.eq.s32.totalorder %s16, 0
      %p145 = por %p143, %p144
      %p146 = scmp.ne.s32.totalorder %s135, %s138
      %p147 = scmp.eq.s32.totalorder %s21, 1
      %p148 = por %p146, %p147
      %p149 = scmp.ne.s32.totalorder %s138, %s139
      %p150 = scmp.eq.s32.totalorder %s21, 0
      %p151 = por %p149, %p150
      %p152 = scmp.ne.s32.totalorder %s138, %s139
      %p153 = scmp.eq.s32.totalorder %s22, 1
      %p154 = por %p152, %p153
      %p156 = scmp.ne.s32.totalorder %s139, %s155
      %p157 = scmp.eq.s32.totalorder %s22, 0
      %p158 = por %p156, %p157
      %p159 = scmp.le.s32.totalorder 1, %s16
      %p160 = scmp.lt.s32.totalorder %s16, 3
      %p161 = pnand %p159, %p160
      %p162 = pneg %p161
      // Predicated region
      $region9: #{tpu_custom_call.1} parent=5 // pred_check
        _
      $region10: #{tpu_custom_call.1} parent=5 // pred_check_branch
        %164 = sbr.rel (%p161) target = $region12
      $region11: #{tpu_custom_call.1} parent=5 // pred_region
        %s165 = ssub.s32 %s16, 1
      $region12: #{tpu_custom_call.1} parent=5 // pred_fallthru
        _
      %p166 = scmp.lt.s32.totalorder %s16, 2
      // Predicated region
      $region13: #{tpu_custom_call.1} parent=5 // pred_check
        %p167 = pneg %p166
      $region14: #{tpu_custom_call.1} parent=5 // pred_check_branch
        %169 = sbr.rel (%p167) target = $region16
      $region15: #{tpu_custom_call.1} parent=5 // pred_region
        // Predicated region
        $region17: #{tpu_custom_call.1} parent=15 // pred_check
          %p170 = pneg %p59
        $region18: #{tpu_custom_call.1} parent=15 // pred_check_branch
          %172 = sbr.rel (%p170) target = $region20
        $region19: #{tpu_custom_call.1} parent=15 // pred_region
          %s173 = sand.u32 %s49, 1
          %s174 = scalar_lea.sflag [#allocation5], %s173
          %s175 = sand.u32 %s49, 1
          %s176 = smul.addr %s175, 8
          %s177 = scalar_lea.vmem [#allocation4], %s176
          %s178 = sadd.s32 %s24, %s25
          %s179 = smul.u32 2, %s178
          %181 = vsyncadd %s174, 0
          %s182 = smul.addr %s23, 2
          %s183 = sadd.s32 %s179, %s182
          %s184 = smul.addr %s183, 4
          %s185 = scalar_lea.hbm %s0, %s184
          %s187 = sshll.u32 %s185, 4
          %s188 = int_to_ptr.hbm [resolvable:$true] %s187
          %s189 = sshll.u32 %s177, 4
          %s190 = int_to_ptr.vmem [resolvable:$true] %s189
          %192 = dma.hbm_to_vmem [thread:$0]  %s188, 128, %s190, %s174
        $region20: #{tpu_custom_call.1} parent=15 // pred_fallthru
          _
        // Predicated region
        $region21: #{tpu_custom_call.1} parent=15 // pred_check
          %p193 = pneg %p89
        $region22: #{tpu_custom_call.1} parent=15 // pred_check_branch
          %195 = sbr.rel (%p193) target = $region24
        $region23: #{tpu_custom_call.1} parent=15 // pred_region
          %s196 = sand.u32 %s79, 1
          %s197 = scalar_lea.sflag [#allocation7], %s196
          %s198 = sand.u32 %s79, 1
          %s199 = smul.addr %s198, 2
          %s200 = scalar_lea.vmem [#allocation6], %s199
          %s201 = sadd.s32 %s24, %s25
          %s202 = smul.u32 2, %s201
          %204 = vsyncadd %s197, 0
          %s205 = smul.addr %s23, 2
          %s206 = sadd.s32 %s202, %s205
          %s207 = scalar_lea.hbm %s1, %s206
          %s209 = sshll.u32 %s207, 4
          %s210 = int_to_ptr.hbm [resolvable:$true] %s209
          %s211 = sshll.u32 %s200, 4
          %s212 = int_to_ptr.vmem [resolvable:$true] %s211
          %214 = dma.hbm_to_vmem [thread:$0]  %s210, 32, %s212, %s197
        $region24: #{tpu_custom_call.1} parent=15 // pred_fallthru
          _
      $region16: #{tpu_custom_call.1} parent=5 // pred_fallthru
        _
      %p215 = scmp.le.s32.totalorder 1, %s16
      %p216 = scmp.lt.s32.totalorder %s16, 3
      %p217 = pnand %p215, %p216
      %p218 = pneg %p217
      // Predicated region
      $region25: #{tpu_custom_call.1} parent=5 // pred_check
        _
      $region26: #{tpu_custom_call.1} parent=5 // pred_check_branch
        %220 = sbr.rel (%p217) target = $region28
      $region27: #{tpu_custom_call.1} parent=5 // pred_region
        %s221 = ssub.s32 %s16, 1
        %s222 = sand.u32 %s52, 1
        %s223 = scalar_lea.sflag [#allocation5], %s222
        %s224 = sand.u32 %s52, 1
        %s225 = smul.addr %s224, 8
        %s226 = scalar_lea.vmem [#allocation4], %s225
        // Predicated region
        $region29: #{tpu_custom_call.1} parent=27 // pred_check
          %p227 = pneg %p65
        $region30: #{tpu_custom_call.1} parent=27 // pred_check_branch
          %229 = sbr.rel (%p227) target = $region32
        $region31: #{tpu_custom_call.1} parent=27 // pred_region
          %231 = dma.done %s223, 128
        $region32: #{tpu_custom_call.1} parent=27 // pred_fallthru
          _
        %s232 = sand.u32 %s82, 1
        %s233 = scalar_lea.sflag [#allocation7], %s232
        %s234 = sand.u32 %s82, 1
        %s235 = smul.addr %s234, 2
        %s236 = scalar_lea.vmem [#allocation6], %s235
        // Predicated region
        $region33: #{tpu_custom_call.1} parent=27 // pred_check
          %p237 = pneg %p95
        $region34: #{tpu_custom_call.1} parent=27 // pred_check_branch
          %239 = sbr.rel (%p237) target = $region36
        $region35: #{tpu_custom_call.1} parent=27 // pred_region
          %241 = dma.done %s233, 32
        $region36: #{tpu_custom_call.1} parent=27 // pred_fallthru
          _
        %s242 = sand.u32 %s52, 1
        %s243 = scalar_lea.sflag [#allocation5], %s242
        %s244 = sand.u32 %s52, 1
        %s245 = smul.addr %s244, 8
        %s246 = scalar_lea.vmem [#allocation4], %s245
        %p247 = pneg %p65
        %p248 = pneg %p62
        %s249 = sand.u32 %s82, 1
        %s250 = scalar_lea.sflag [#allocation7], %s249
        %s251 = sand.u32 %s82, 1
        %s252 = smul.addr %s251, 2
        %s253 = scalar_lea.vmem [#allocation6], %s252
        %p254 = pneg %p95
        %p255 = pneg %p92
        %p256 = pneg %p123
        %p257 = pneg %p120
        %p258 = scmp.lt.s32.totalorder %s26, 1
        %s259 = scalar_select %p258, %s26, 1
        %p260 = scmp.lt.s32.totalorder %s27, 0
        %s261 = scalar_select %p260, %s27, 0
        %s262 = sadd.s32 %s261, %s259
        %s263 = smul.addr %s262, 4
        %s264 = scalar_lea.vmem %s2, %s263
        %p265 = pneg %p151
        %p266 = pneg %p148
        %p267 = scmp.lt.s32.totalorder %s26, 1
        %s268 = scalar_select %p267, %s26, 1
        %p269 = scmp.lt.s32.totalorder %s27, 0
        %s270 = scalar_select %p269, %s27, 0
        %s271 = sadd.s32 %s270, %s268
        %s272 = smul.addr %s271, 4
        %s273 = scalar_lea.vmem %s3, %s272
        %s274 = sadd.s32 %s27, %s28
        %s275 = smul.u32 2, %s274
        %s276 = sadd.s32 %s27, %s28
        %s277 = smul.u32 2, %s276
        %p278 = scmp.lt.s32.totalorder %s26, 1
        %s279 = scalar_select %p278, %s26, 1
        %p280 = scmp.lt.s32.totalorder %s27, 0
        %s281 = scalar_select %p280, %s27, 0
        %s282 = sadd.s32 %s281, %s279
        %s283 = smul.addr %s282, 4
        %s284 = scalar_lea.vmem %s2, %s283
        %p285 = scmp.lt.s32.totalorder %s26, 1
        %s286 = scalar_select %p285, %s26, 1
        %p287 = scmp.lt.s32.totalorder %s27, 0
        %s288 = scalar_select %p287, %s27, 0
        %s289 = sadd.s32 %s288, %s286
        %s290 = smul.addr %s289, 4
        %s291 = scalar_lea.vmem %s3, %s290
        %p292 = scmp.eq.s32.totalorder %s28, 0
        // Predicated region
        $region37: #{tpu_custom_call.1} parent=27 // pred_check
          %p293 = pneg %p292
        $region38: #{tpu_custom_call.1} parent=27 // pred_check_branch
          %295 = sbr.rel (%p293) target = $region40
        $region39: #{tpu_custom_call.1} parent=27 // pred_region
          %vm296 = vcmask 3072
          %297 = vst.msk [vmem:[#allocation2] sm:$0xf] %vm296, 0.0
          %298 = vst.msk [vmem:[#allocation3] sm:$0xf] %vm296, 0.0
        $region40: #{tpu_custom_call.1} parent=27 // pred_fallthru
          _
        %v299 = vld [vmem:[%s226] sm:$0xff]
        %v300 = vld [vmem:[%s236] sm:$0x3]
        %302 = vst [vmem:[#allocation1] ss:$2 sm:$0xff] %v299
        %v303 = vld.sshfl [vmem:[#allocation1] sm:$0xff pattern:$0x75316420]
        %v304 = vld.sshfl [vmem:[#allocation1 + $0x8] sm:$0xff pattern:$0x75316420]
        %vm307 = vcmask 1043456
        %v308 = vsel %vm307, %v303, -inf
        %v309 = vrot.slane %v308, 4
        %v310 = vmax.f32 %v308, %v309
        %v311 = vrot.slane %v310, 2
        %v312 = vmax.f32 %v310, %v311
        %v313 = vrot.slane %v312, 1
        %v314 = vmax.f32 %v312, %v313
        %v315 = vsel %vm307, %v304, -inf
        %v316 = vrot.slane %v315, 4
        %v317 = vmax.f32 %v315, %v316
        %v318 = vrot.slane %v317, 2
        %v319 = vmax.f32 %v317, %v318
        %v320 = vrot.slane %v319, 1
        %v321 = vmax.f32 %v319, %v320
        %v324 = vrot.slane %v321, 4
        %v325 = vsel %vm307, %v314, %v324
        %v327 = vsub.f32 %v299, %v325
        %v328 = vmul.f32 %v327, 1.442695
        %v329 = vpow.pop %v328
        %331 = vst [vmem:[#allocation1] ss:$2 sm:$0xff] %v329
        %v332 = vld.sshfl [vmem:[#allocation1] sm:$0xff pattern:$0x75316420]
        %v333 = vld.sshfl [vmem:[#allocation1 + $0x8] sm:$0xff pattern:$0x75316420]
        %v336 = vsel %vm307, %v332, 0.0
        %v337 = vrot.slane %v336, 4
        %v338 = vadd.f32 %v336, %v337
        %v339 = vrot.slane %v338, 2
        %v340 = vadd.f32 %v338, %v339
        %v341 = vrot.slane %v340, 1
        %v342 = vadd.f32 %v340, %v341
        %v343 = vsel %vm307, %v333, 0.0
        %v344 = vrot.slane %v343, 4
        %v345 = vadd.f32 %v343, %v344
        %v346 = vrot.slane %v345, 2
        %v347 = vadd.f32 %v345, %v346
        %v348 = vrot.slane %v347, 1
        %v349 = vadd.f32 %v347, %v348
        %v350 = vlog2.pop %v342
        %v351 = vmul.f32 %v350, 0.6931472
        %v352 = vlog2.pop %v349
        %v353 = vmul.f32 %v352, 0.6931472
        %v354 = vadd.f32 %v351, %v314
        %v355 = vadd.f32 %v353, %v321
        %356 = vst [vmem:[#allocation1] ss:$2 sm:$0xff] %v299
        %v357 = vld.sshfl [vmem:[#allocation1] sm:$0xff pattern:$0x75316420]
        %v358 = vld.sshfl [vmem:[#allocation1 + $0x8] sm:$0xff pattern:$0x75316420]
        %v361 = vsub.f32 %v354, %v357
        %v362 = vsub.f32 %v355, %v358
        %v363 = vlaneseq
        %v364 = vshrl.u32 %v363, 7
        %vm365 = vcmp.ge.s32.totalorder %v300, 0
        %vm366 = vcmp.lt.s32.totalorder %v300, 4
        %vm367 = vmand %vm365, %vm366
        %v368 = vsel %vm367, %v300, 4294967295
        %v369 = vperm.slane %v368, 0
        %v370 = vperm.slane %v368, 1
        %vm371 = vcmp.eq.s32.totalorder %v369, %v364
        %vm372 = vcmp.eq.s32.totalorder %v370, %v364
        %v373 = vld [vmem:[#allocation2] sm:$0xf]
        %v374 = vsel %vm371, %v361, 0.0
        %v375 = vsel %vm372, %v362, 0.0
        %v376 = vsel %vm307, %v374, 0.0
        %v377 = vsel %vm307, %v375, 0.0
        %v378 = vadd.f32 %v376, %v377
        %379 = vadd.xlane.f32.xlu0 %v378
        %v380 = vpop.xlane.xlu0 %379
        %v381 = vadd.f32 %v373, %v380
        %vm382 = vcmask 3072
        %383 = vst.msk [vmem:[#allocation2] sm:$0xf] %vm382, %v381
        %v384 = vld [vmem:[#allocation3] sm:$0xf]
        %v385 = vsel %vm371, 1, 0
        %v386 = vsel %vm372, 1, 0
        %v387 = vcvt.s32.f32 %v385
        %v388 = vcvt.s32.f32 %v386
        %v389 = vsel %vm307, %v387, 0.0
        %v390 = vsel %vm307, %v388, 0.0
        %v391 = vadd.f32 %v389, %v390
        %392 = vadd.xlane.f32.xlu0 %v391
        %v393 = vpop.xlane.xlu0 %392
        %v394 = vadd.f32 %v384, %v393
        %395 = vst.msk [vmem:[#allocation3] sm:$0xf] %vm382, %v394
        // Predicated region
        $region41: #{tpu_custom_call.1} parent=27 // pred_check
          %p396 = pneg %p292
        $region42: #{tpu_custom_call.1} parent=27 // pred_check_branch
          %398 = sbr.rel (%p396) target = $region44
        $region43: #{tpu_custom_call.1} parent=27 // pred_region
          %v399 = vld [vmem:[#allocation2] sm:$0xf]
          %400 = vst.msk [vmem:[%s284] sm:$0xf] %vm382, %v399
          %v401 = vld [vmem:[#allocation3] sm:$0xf]
          %402 = vst.msk [vmem:[%s291] sm:$0xf] %vm382, %v401
        $region44: #{tpu_custom_call.1} parent=27 // pred_fallthru
          _
        %p403 = scmp.lt.s32.totalorder %s26, 1
        %s404 = scalar_select %p403, %s26, 1
        %p405 = scmp.lt.s32.totalorder %s27, 0
        %s406 = scalar_select %p405, %s27, 0
        %s407 = sadd.s32 %s406, %s404
        %s408 = smul.addr %s407, 4
        %s409 = scalar_lea.vmem %s2, %s408
        %p410 = scmp.lt.s32.totalorder %s26, 1
        %s411 = scalar_select %p410, %s26, 1
        %p412 = scmp.lt.s32.totalorder %s27, 0
        %s413 = scalar_select %p412, %s27, 0
        %s414 = sadd.s32 %s413, %s411
        %s415 = smul.addr %s414, 4
        %s416 = scalar_lea.vmem %s3, %s415
        // Predicated region
        $region45: #{tpu_custom_call.1} parent=27 // pred_check
          %p417 = pneg %p120
        $region46: #{tpu_custom_call.1} parent=27 // pred_check_branch
          %419 = sbr.rel (%p417) target = $region48
        $region47: #{tpu_custom_call.1} parent=27 // pred_region
          _
        $region48: #{tpu_custom_call.1} parent=27 // pred_fallthru
          _
        // Predicated region
        $region49: #{tpu_custom_call.1} parent=27 // pred_check
          %p420 = pneg %p148
        $region50: #{tpu_custom_call.1} parent=27 // pred_check_branch
          %422 = sbr.rel (%p420) target = $region52
        $region51: #{tpu_custom_call.1} parent=27 // pred_region
          _
        $region52: #{tpu_custom_call.1} parent=27 // pred_fallthru
          _
      $region28: #{tpu_custom_call.1} parent=5 // pred_fallthru
        _
      %p423 = scmp.le.s32.totalorder 2, %s16
      // Predicated region
      $region53: #{tpu_custom_call.1} parent=5 // pred_check
        %p424 = pneg %p423
      $region54: #{tpu_custom_call.1} parent=5 // pred_check_branch
        %426 = sbr.rel (%p424) target = $region56
      $region55: #{tpu_custom_call.1} parent=5 // pred_region
        %s427 = ssub.s32 %s16, 2
        // Predicated region
        $region57: #{tpu_custom_call.1} parent=55 // pred_check
          %p428 = pneg %p126
        $region58: #{tpu_custom_call.1} parent=55 // pred_check_branch
          %430 = sbr.rel (%p428) target = $region60
        $region59: #{tpu_custom_call.1} parent=55 // pred_region
          %p431 = scmp.lt.s32.totalorder %s29, 1
          %s432 = scalar_select %p431, %s29, 1
          %p433 = scmp.lt.s32.totalorder %s30, 0
          %s434 = scalar_select %p433, %s30, 0
          %s435 = sadd.s32 %s434, %s432
          %s436 = smul.addr %s435, 4
          %s437 = scalar_lea.vmem %s2, %s436
        $region60: #{tpu_custom_call.1} parent=55 // pred_fallthru
          _
        // Predicated region
        $region61: #{tpu_custom_call.1} parent=55 // pred_check
          %p438 = pneg %p154
        $region62: #{tpu_custom_call.1} parent=55 // pred_check_branch
          %440 = sbr.rel (%p438) target = $region64
        $region63: #{tpu_custom_call.1} parent=55 // pred_region
          %p441 = scmp.lt.s32.totalorder %s29, 1
          %s442 = scalar_select %p441, %s29, 1
          %p443 = scmp.lt.s32.totalorder %s30, 0
          %s444 = scalar_select %p443, %s30, 0
          %s445 = sadd.s32 %s444, %s442
          %s446 = smul.addr %s445, 4
          %s447 = scalar_lea.vmem %s3, %s446
        $region64: #{tpu_custom_call.1} parent=55 // pred_fallthru
          _
      $region56: #{tpu_custom_call.1} parent=5 // pred_fallthru
        _
    $region6: #{tpu_custom_call.1} parent=1 // loop_footer
      %s20 = sadd.s32 1, %s16
    $region7: #{tpu_custom_call.1} parent=1 // loop_footer_branch
      %15 = sbr.rel target = $region3
    $region8: #{tpu_custom_call.1} parent=1 // loop_exit
      _
    %448 = vsyncpa [#allocation5], 1
    %s449 = scalar_lea.sflag [#allocation5], 1
    %450 = vsyncpa %s449, 1
    %451 = vsyncpa [#allocation7], 1
    %s452 = scalar_lea.sflag [#allocation7], 1
    %453 = vsyncpa %s452, 1

</llo_original>
